<compile_context>
chip_gen: v7x
topology: tpu7x:2x2x1
jax: 0.10.0
libtpu: 0.0.40
codegen_flags: <defaults>
</compile_context>

<pallas_src>
import functools

import jax
import jax.numpy as jnp
from jax.experimental import pallas as pl
from jax.experimental.pallas import tpu as pltpu


LANE = 128  # lane-dense output width (multiple of 128)


def _round_up(n, m):
    return ((n + m - 1) // m) * m


# ----------------------------------------------------------------------------
# Pallas kernel: two fused MXU dots + one tanh per batch tile.
# ----------------------------------------------------------------------------
def actor_critic_kernel(
    x_ref,    # [TB, D]
    w1_ref,   # [D, Hp]      = [actor_W1 | critic_W1 | 0-pad]
    b1_ref,   # [1, Hp]
    w2_ref,   # [Hp, LANE]   block-diagonal: actor_W2 top-left, critic_W2 at col A
    b2_ref,   # [1, LANE]
    out_ref,  # [TB, LANE]   cols 0..A-1 = mu, col A = value, rest = padding
):
    h = jnp.tanh(
        jnp.dot(x_ref[...], w1_ref[...], preferred_element_type=jnp.float32)
        + b1_ref[...]
    )
    y = (
        jnp.dot(h, w2_ref[...], preferred_element_type=jnp.float32)
        + b2_ref[...]
    )
    out_ref[...] = y.astype(out_ref.dtype)


# ----------------------------------------------------------------------------
# Wrapper: batch-tiled pallas_call, lane-dense output slab, std in wrapper.
# ----------------------------------------------------------------------------
@functools.partial(jax.jit, static_argnames=("num_outputs", "block_b"))
def actor_critic_forward(x, packed, num_outputs, block_b=512):
    B, D = x.shape
    Hp = packed["w1"].shape[1]   # padded 2H (multiple of 128)
    A = num_outputs

    # Choose a batch tile: multiple of 8 (sublane), capped at block_b.
    if B >= block_b:
        TB = block_b
    else:
        TB = _round_up(B, 8)
    Bp = _round_up(B, TB)
    if Bp != B:
        x = jnp.pad(x, ((0, Bp - B), (0, 0)))

    grid = (Bp // TB,)

    out = pl.pallas_call(
        actor_critic_kernel,
        out_shape=jax.ShapeDtypeStruct((Bp, LANE), jnp.float32),
        grid=grid,
        in_specs=[
            pl.BlockSpec((TB, D), lambda i: (i, 0)),       # x: tiled over batch
            pl.BlockSpec((D, Hp), lambda i: (0, 0)),       # weights VMEM-resident
            pl.BlockSpec((1, Hp), lambda i: (0, 0)),
            pl.BlockSpec((Hp, LANE), lambda i: (0, 0)),
            pl.BlockSpec((1, LANE), lambda i: (0, 0)),
        ],
        out_specs=pl.BlockSpec((TB, LANE), lambda i: (i, 0)),
        compiler_params=pltpu.CompilerParams(
            dimension_semantics=("parallel",),
        ),
    )(x, packed["w1"], packed["b1"], packed["w2"], packed["b2"])

    mu = out[:B, :A]
    value = out[:B, A:A + 1]
    # std is x-independent: computed outside the kernel, broadcast lazily.
    std = jnp.broadcast_to(jnp.exp(packed["log_std"]), (B, A))

    # Normal(mu, std) is returned as its parameter pair (mu, std).
    return (mu, std), value


# ----------------------------------------------------------------------------
# Parameter construction (mirrors nn.init.orthogonal_ + zero bias), plus
# packing into the fused / lane-dense layout used by the kernel.
# ----------------------------------------------------------------------------
def orthogonal(key, out_features, in_features, gain):
    a = jax.random.normal(key, (out_features, in_features), dtype=jnp.float32)
    flat = a if out_features >= in_features else a.T
    q, r = jnp.linalg.qr(flat)
    q = q * jnp.sign(jnp.diagonal(r))
    if out_features < in_features:
        q = q.T
    q = q[:out_features, :in_features]
    return gain * q  # [out, in] like PyTorch nn.Linear.weight


def init_params(key, num_inputs, num_outputs, hidden_size, std_init=0.0):
    ks = jax.random.split(key, 4)
    sqrt2 = float(jnp.sqrt(2.0))

    # Stored transposed ([in, out]) so the kernel computes y = x @ W + b.
    aw1 = orthogonal(ks[0], hidden_size, num_inputs, sqrt2).T   # [D, H]
    ab1 = jnp.zeros((1, hidden_size), jnp.float32)
    aw2 = orthogonal(ks[1], num_outputs, hidden_size, sqrt2).T  # [H, A]
    ab2 = jnp.zeros((1, num_outputs), jnp.float32)

    cw1 = orthogonal(ks[2], hidden_size, num_inputs, sqrt2).T   # [D, H]
    cb1 = jnp.zeros((1, hidden_size), jnp.float32)
    cw2 = orthogonal(ks[3], 1, hidden_size, 1.0).T              # [H, 1]
    cb2 = jnp.zeros((1, 1), jnp.float32)

    log_std = jnp.ones((1, num_outputs), jnp.float32) * std_init

    return dict(
        aw1=aw1, ab1=ab1, aw2=aw2, ab2=ab2,
        cw1=cw1, cb1=cb1, cw2=cw2, cb2=cb2,
        log_std=log_std,
    )


def pack_params(p):
    """Pack raw params into the fused kernel layout (done once, outside jit)."""
    D, H = p["aw1"].shape
    A = p["aw2"].shape[1]
    assert A + 1 <= LANE, "num_outputs + 1 must fit in one 128-lane slab"

    # Padded hidden width: lane-dense intermediate h, full-lane MXU dots.
    Hp = _round_up(2 * H, LANE)

    # Layer 1: [D, Hp] = [actor_W1 | critic_W1 | 0-pad],  bias [1, Hp].
    # tanh(0 + 0) = 0 in the padded columns, and the matching w2 rows are
    # zero, so padding does not change the result.
    w1 = jnp.zeros((D, Hp), jnp.float32)
    w1 = w1.at[:, :H].set(p["aw1"])
    w1 = w1.at[:, H:2 * H].set(p["cw1"])
    b1 = jnp.zeros((1, Hp), jnp.float32)
    b1 = b1.at[:, :H].set(p["ab1"])
    b1 = b1.at[:, H:2 * H].set(p["cb1"])

    # Layer 2: block-diagonal, lane-dense [Hp, LANE].
    #   rows 0..H-1,   cols 0..A-1 -> actor_W2  (mu)
    #   rows H..2H-1,  col  A      -> critic_W2 (value)
    w2 = jnp.zeros((Hp, LANE), jnp.float32)
    w2 = w2.at[:H, :A].set(p["aw2"])
    w2 = w2.at[H:2 * H, A:A + 1].set(p["cw2"])

    b2 = jnp.zeros((1, LANE), jnp.float32)
    b2 = b2.at[:, :A].set(p["ab2"])
    b2 = b2.at[:, A:A + 1].set(p["cb2"])

    return dict(w1=w1, b1=b1, w2=w2, b2=b2, log_std=p["log_std"])


# Pure-JAX reference (unfused) for a correctness check.
def reference_forward(x, p):
    h_a = jnp.tanh(x @ p["aw1"] + p["ab1"])
    mu = h_a @ p["aw2"] + p["ab2"]
    h_c = jnp.tanh(x @ p["cw1"] + p["cb1"])
    value = h_c @ p["cw2"] + p["cb2"]
    std = jnp.broadcast_to(jnp.exp(p["log_std"]), mu.shape)
    return mu, std, value


if __name__ == "__main__":
    B, D, H, A = 8, 32, 32, 8   # batch, num_inputs, hidden_size, num_outputs

    key = jax.random.PRNGKey(0)
    k_param, k_x = jax.random.split(key)

    params = init_params(k_param, num_inputs=D, num_outputs=A, hidden_size=H,
                         std_init=0.0)
    packed = pack_params(params)
    x = jax.random.normal(k_x, (B, D), dtype=jnp.float32)

    (mu, std), value = actor_critic_forward(x, packed, num_outputs=A)
    jax.block_until_ready((mu, std, value))

    mu_ref, std_ref, value_ref = reference_forward(x, params)
    assert mu.shape == (B, A) and std.shape == (B, A) and value.shape == (B, 1)
    assert jnp.allclose(mu, mu_ref, atol=1e-5), "mu mismatch"
    assert jnp.allclose(std, std_ref, atol=1e-5), "std mismatch"
    assert jnp.allclose(value, value_ref, atol=1e-5), "value mismatch"

    # Also exercise a non-tile-multiple, multi-tile batch path.
    B2 = 600
    x2 = jax.random.normal(jax.random.PRNGKey(1), (B2, D), dtype=jnp.float32)
    (mu2, std2), value2 = actor_critic_forward(x2, packed, num_outputs=A,
                                               block_b=256)
    jax.block_until_ready((mu2, std2, value2))
    mu2_ref, std2_ref, value2_ref = reference_forward(x2, params)
    assert jnp.allclose(mu2, mu2_ref, atol=1e-5), "mu mismatch (large B)"
    assert jnp.allclose(value2, value2_ref, atol=1e-5), "value mismatch (large B)"

    print("KERNEL_OK")
</pallas_src>

<mosaic_0001>
module attributes {stable_mosaic.version = 11 : i64} {
  func.func @actor_critic_kernel(%arg0: i32, %arg1: memref<8x32xf32, #tpu.memory_space<vmem>>, %arg2: memref<32x128xf32, #tpu.memory_space<vmem>>, %arg3: memref<1x128xf32, #tpu.memory_space<vmem>>, %arg4: memref<128x128xf32, #tpu.memory_space<vmem>>, %arg5: memref<1x128xf32, #tpu.memory_space<vmem>>, %arg6: memref<8x128xf32, #tpu.memory_space<vmem>>) attributes {dimension_semantics = [#tpu.dimension_semantics<parallel>], iteration_bounds = array<i64: 1>, scalar_prefetch = 0 : i64, scratch_operands = 0 : i64, tpu.core_type = #tpu.core_type<tc>, window_params = [{transform_indices = @transform_0, window_bounds = array<i64: 8, 32>}, {pipeline_mode = #tpu.pipeline_mode<synchronous>, transform_indices = @transform_1, window_bounds = array<i64: 32, 128>}, {pipeline_mode = #tpu.pipeline_mode<synchronous>, transform_indices = @transform_2, window_bounds = array<i64: 1, 128>}, {pipeline_mode = #tpu.pipeline_mode<synchronous>, transform_indices = @transform_3, window_bounds = array<i64: 128, 128>}, {pipeline_mode = #tpu.pipeline_mode<synchronous>, transform_indices = @transform_4, window_bounds = array<i64: 1, 128>}, {transform_indices = @transform_5, window_bounds = array<i64: 8, 128>}]} {
    %c0 = arith.constant 0 : index
    %c0_0 = arith.constant 0 : index
    %0 = vector.load %arg1[%c0, %c0_0] : memref<8x32xf32, #tpu.memory_space<vmem>>, vector<8x32xf32>
    %c0_1 = arith.constant 0 : index
    %c0_2 = arith.constant 0 : index
    %1 = vector.load %arg2[%c0_1, %c0_2] : memref<32x128xf32, #tpu.memory_space<vmem>>, vector<32x128xf32>
    %cst = arith.constant dense<0.000000e+00> : vector<8x128xf32>
    %2 = tpu.matmul %0, %1, %cst {dimension_numbers = #tpu.dot_dimension_numbers<[1], [0], [0], [1], [0, 0, 1, 1], [], []>} : vector<8x32xf32>, vector<32x128xf32>, vector<8x128xf32> -> vector<8x128xf32>
    %c0_3 = arith.constant 0 : index
    %c0_4 = arith.constant 0 : index
    %3 = vector.load %arg3[%c0_3, %c0_4] : memref<1x128xf32, #tpu.memory_space<vmem>>, vector<1x128xf32>
    %4 = vector.broadcast %3 : vector<1x128xf32> to vector<8x128xf32>
    %5 = arith.addf %2, %4 : vector<8x128xf32>
    %6 = math.tanh %5 : vector<8x128xf32>
    %c0_5 = arith.constant 0 : index
    %c0_6 = arith.constant 0 : index
    %7 = vector.load %arg4[%c0_5, %c0_6] : memref<128x128xf32, #tpu.memory_space<vmem>>, vector<128x128xf32>
    %cst_7 = arith.constant dense<0.000000e+00> : vector<8x128xf32>
    %8 = tpu.matmul %6, %7, %cst_7 {dimension_numbers = #tpu.dot_dimension_numbers<[1], [0], [0], [1], [0, 0, 1, 1], [], []>} : vector<8x128xf32>, vector<128x128xf32>, vector<8x128xf32> -> vector<8x128xf32>
    %c0_8 = arith.constant 0 : index
    %c0_9 = arith.constant 0 : index
    %9 = vector.load %arg5[%c0_8, %c0_9] : memref<1x128xf32, #tpu.memory_space<vmem>>, vector<1x128xf32>
    %10 = vector.broadcast %9 : vector<1x128xf32> to vector<8x128xf32>
    %11 = arith.addf %8, %10 : vector<8x128xf32>
    %c0_10 = arith.constant 0 : index
    %c0_11 = arith.constant 0 : index
    %12 = vector.load %arg6[%c0_10, %c0_11] : memref<8x128xf32, #tpu.memory_space<vmem>>, vector<8x128xf32>
    tpu.vector_store %arg6[%c0_10, %c0_11], %11 {strides = array<i32>} : memref<8x128xf32, #tpu.memory_space<vmem>>, vector<8x128xf32>,
    return
  }
  func.func @transform_0(%arg0: i32) -> (i32, i32) {
    %c0_i32 = arith.constant 0 : i32
    %c0_i32_0 = arith.constant 0 : i32
    return %arg0, %c0_i32 : i32, i32
  }
  func.func @transform_1(%arg0: i32) -> (i32, i32) {
    %c0_i32 = arith.constant 0 : i32
    %c0_i32_0 = arith.constant 0 : i32
    %c0_i32_1 = arith.constant 0 : i32
    return %c0_i32, %c0_i32_0 : i32, i32
  }
  func.func @transform_2(%arg0: i32) -> (i32, i32) {
    %c0_i32 = arith.constant 0 : i32
    %c0_i32_0 = arith.constant 0 : i32
    %c0_i32_1 = arith.constant 0 : i32
    return %c0_i32, %c0_i32_0 : i32, i32
  }
  func.func @transform_3(%arg0: i32) -> (i32, i32) {
    %c0_i32 = arith.constant 0 : i32
    %c0_i32_0 = arith.constant 0 : i32
    %c0_i32_1 = arith.constant 0 : i32
    return %c0_i32, %c0_i32_0 : i32, i32
  }
  func.func @transform_4(%arg0: i32) -> (i32, i32) {
    %c0_i32 = arith.constant 0 : i32
    %c0_i32_0 = arith.constant 0 : i32
    %c0_i32_1 = arith.constant 0 : i32
    return %c0_i32, %c0_i32_0 : i32, i32
  }
  func.func @transform_5(%arg0: i32) -> (i32, i32) {
    %c0_i32 = arith.constant 0 : i32
    %c0_i32_0 = arith.constant 0 : i32
    return %arg0, %c0_i32 : i32, i32
  }
}

</mosaic_0001>

<llo_original>
// kernel: actor_critic_forward.1
$region0: #{actor_critic_forward.1}
  #allocation0 [shape = 'u32[]', space=smem, size = 0x4, offset = 0x4, fixed_abs, tag = 'smem constant byte address 0x4 - core index']
  #allocation1 [shape = 'u32[144,128]{1,0:T(1,128)}', space=vmem, size = 0x12000, scoped, tag = 'internal scratch']
  %s0 = inlined_call_operand.hbm [shape: f32[8,32], index: 0, kind: input, shape index: {}]
  %s1 = inlined_call_operand.hbm [shape: f32[32,128], index: 1, kind: input, shape index: {}]
  %s2 = inlined_call_operand.vmem [shape: f32[1,128], index: 2, kind: input, shape index: {}]
  %s3 = inlined_call_operand.hbm [shape: f32[128,128], index: 3, kind: input, shape index: {}]
  %s4 = inlined_call_operand.vmem [shape: f32[1,128], index: 4, kind: input, shape index: {}]
  %s5 = inlined_call_operand.vmem [shape: f32[8,128], index: 5, kind: output, shape index: {}]
  %s6 = sld [smem:[#allocation0]]
  $region42: #{actor_critic_forward.1} parent=0
    _
  %s8 = ssub.s32 1, %s6
  %s9 = scalar_select 0, %s8, %s6
  $region1: #{actor_critic_forward.1} parent=0
    #allocation2 [shape = 'u8[4096]{0}', space=vmem, size = 0x1000, scoped, tag = 'input window, operand 0, single buffered']
    #allocation3 [shape = 's32[1]{0}', space=sflag, size = 0x4, scoped, tag = 'scoped memory for actor_critic_forward.1']
    #allocation4 [shape = 'u8[16384]{0}', space=vmem, size = 0x4000, scoped, tag = 'input window, operand 1, single buffered']
    #allocation5 [shape = 's32[1]{0}', space=sflag, size = 0x4, scoped, tag = 'scoped memory for actor_critic_forward.1']
    #allocation6 [shape = 'u8[65536]{0}', space=vmem, size = 0x10000, scoped, tag = 'input window, operand 3, single buffered']
    %10 = vsyncpa [#allocation3], 0
    %11 = vsyncpa [#allocation5], 0
    // Predicated region
    $region2: #{actor_critic_forward.1} parent=1 // pred_check
      _
    $region3: #{actor_critic_forward.1} parent=1 // pred_check_branch
      %13 = sbr.rel (0) target = $region5
    $region4: #{actor_critic_forward.1} parent=1 // pred_region
      %s15 = ssub.s32 128, 128
      %16 = vsyncadd [#allocation3], %s15
      %s18 = sshll.u32 [#allocation2], 4
      %s19 = int_to_ptr.vmem [resolvable:$true] %s18
      %21 = dma.hbm_to_vmem [thread:$0]  %s0, 128, %s19, [#allocation3]
    $region5: #{actor_critic_forward.1} parent=1 // pred_fallthru
      _
    // Predicated region
    $region6: #{actor_critic_forward.1} parent=1 // pred_check
      _
    $region7: #{actor_critic_forward.1} parent=1 // pred_check_branch
      %23 = sbr.rel (0) target = $region9
    $region8: #{actor_critic_forward.1} parent=1 // pred_region
      %s25 = ssub.s32 512, 512
      %26 = vsyncadd [#allocation5], %s25
      %s27 = sshll.u32 [#allocation4], 4
      %s28 = int_to_ptr.vmem [resolvable:$true] %s27
      %33 = dma.hbm_to_vmem [thread:$0]  %s1, 512, %s28, [#allocation5], 128, 128, 8
    $region9: #{actor_critic_forward.1} parent=1 // pred_fallthru
      _
    // Predicated region
    $region10: #{actor_critic_forward.1} parent=1 // pred_check
      _
    $region11: #{actor_critic_forward.1} parent=1 // pred_check_branch
      %35 = sbr.rel (0) target = $region13
    $region12: #{actor_critic_forward.1} parent=1 // pred_region
      _
    $region13: #{actor_critic_forward.1} parent=1 // pred_fallthru
      _
    // Predicated region
    $region14: #{actor_critic_forward.1} parent=1 // pred_check
      _
    $region15: #{actor_critic_forward.1} parent=1 // pred_check_branch
      %37 = sbr.rel (0) target = $region17
    $region16: #{actor_critic_forward.1} parent=1 // pred_region
      %s39 = ssub.s32 2048, 2048
      %40 = vsyncadd [#allocation5], %s39
      %s41 = sshll.u32 [#allocation6], 4
      %s42 = int_to_ptr.vmem [resolvable:$true] %s41
      %47 = dma.hbm_to_vmem [thread:$0]  %s3, 2048, %s42, [#allocation5], 128, 128, 8
    $region17: #{actor_critic_forward.1} parent=1 // pred_fallthru
      _
    // Predicated region
    $region18: #{actor_critic_forward.1} parent=1 // pred_check
      _
    $region19: #{actor_critic_forward.1} parent=1 // pred_check_branch
      %49 = sbr.rel (0) target = $region21
    $region20: #{actor_critic_forward.1} parent=1 // pred_region
      _
    $region21: #{actor_critic_forward.1} parent=1 // pred_fallthru
      _
    // Predicated region
    $region22: #{actor_critic_forward.1} parent=1 // pred_check
      _
    $region23: #{actor_critic_forward.1} parent=1 // pred_check_branch
      %51 = sbr.rel (0) target = $region25
    $region24: #{actor_critic_forward.1} parent=1 // pred_region
      %52 = dma.done [#allocation3], 128
    $region25: #{actor_critic_forward.1} parent=1 // pred_fallthru
      _
    // Predicated region
    $region26: #{actor_critic_forward.1} parent=1 // pred_check
      _
    $region27: #{actor_critic_forward.1} parent=1 // pred_check_branch
      %54 = sbr.rel (0) target = $region29
    $region28: #{actor_critic_forward.1} parent=1 // pred_region
      %55 = dma.done [#allocation5], 512
    $region29: #{actor_critic_forward.1} parent=1 // pred_fallthru
      _
    // Predicated region
    $region30: #{actor_critic_forward.1} parent=1 // pred_check
      _
    $region31: #{actor_critic_forward.1} parent=1 // pred_check_branch
      %57 = sbr.rel (0) target = $region33
    $region32: #{actor_critic_forward.1} parent=1 // pred_region
      %58 = dma.done [#allocation5], 2048
    $region33: #{actor_critic_forward.1} parent=1 // pred_fallthru
      _
    %v59 = vld [vmem:[#allocation2] sm:$0xff]
    %v60 = vld [vmem:[#allocation4] sm:$0xff]
    %v61 = vld [vmem:[#allocation4 + $0x8] sm:$0xff]
    %v62 = vld [vmem:[#allocation4 + $0x10] sm:$0xff]
    %v63 = vld [vmem:[#allocation4 + $0x18] sm:$0xff]
    %v64 = vld [vmem:[%s2] sm:$0x1]
    %v66 = vlaneseq
    %v67 = vshrl.u32 %v66, 7
    %v68 = vsub.s32 0, %v67
    %v69 = vrot.slane %v64, %v68
    %vm71 = vcmask 261120
    %v73 = vsel %vm71, %v59, 0
    %75 = vmatprep.subr.mxu0 0.0
    %76 = vmatpush1.msra.mxu0 %v60
    %77 = vmatprep.subr.mxu0 0.0
    %78 = vmatpush1.msra.mxu0 %v61
    %79 = vmatprep.subr.mxu0 0.0
    %80 = vmatpush1.msra.mxu0 %v62
    %81 = vmatprep.subr.mxu0 0.0
    %82 = vmatpush1.msra.mxu0 %v63
    %83 = vmatprep.subr.mxu0 0.0
    %84 = vmatpush1.msra.mxu0 0.0
    %85 = vmatprep.subr.mxu0 0.0
    %86 = vmatpush1.msra.mxu0 0.0
    %87 = vmatprep.subr.mxu0 0.0
    %88 = vmatpush1.msra.mxu0 0.0
    %89 = vmatprep.subr.mxu0 0.0
    %90 = vmatpush1.msra.mxu0 0.0
    %91 = vmatprep.subr.mxu0 0.0
    %92 = vmatpush1.msra.mxu0 0.0
    %93 = vmatprep.subr.mxu0 0.0
    %94 = vmatpush1.msra.mxu0 0.0
    %95 = vmatprep.subr.mxu0 0.0
    %96 = vmatpush1.msra.mxu0 0.0
    %97 = vmatprep.subr.mxu0 0.0
    %98 = vmatpush1.msra.mxu0 0.0
    %99 = vmatprep.subr.mxu0 0.0
    %100 = vmatpush1.msra.mxu0 0.0
    %101 = vmatprep.subr.mxu0 0.0
    %102 = vmatpush1.msra.mxu0 0.0
    %103 = vmatprep.subr.mxu0 0.0
    %104 = vmatpush1.msra.mxu0 0.0
    %105 = vmatprep.subr.mxu0 0.0
    %106 = vmatpush1.msra.mxu0 0.0
    %107 = vmatprep.subr.mxu0 0.0
    %108 = vmatpush1.msra.mxu0 0.0
    %109 = vmatprep.subr.mxu0 0.0
    %110 = vmatpush1.msra.mxu0 0.0
    %111 = vmatprep.subr.mxu0 0.0
    %112 = vmatpush1.msra.mxu0 0.0
    %113 = vmatprep.subr.mxu0 0.0
    %114 = vmatpush1.msra.mxu0 0.0
    %115 = vmatprep.subr.mxu0 0.0
    %116 = vmatpush1.msra.mxu0 0.0
    %117 = vmatprep.subr.mxu0 0.0
    %118 = vmatpush1.msra.mxu0 0.0
    %119 = vmatprep.subr.mxu0 0.0
    %120 = vmatpush1.msra.mxu0 0.0
    %121 = vmatprep.subr.mxu0 0.0
    %122 = vmatpush1.msra.mxu0 0.0
    %123 = vmatprep.subr.mxu0 0.0
    %124 = vmatpush1.msra.mxu0 0.0
    %125 = vmatprep.subr.mxu0 0.0
    %126 = vmatpush1.msra.mxu0 0.0
    %127 = vmatprep.subr.mxu0 0.0
    %128 = vmatpush1.msra.mxu0 0.0
    %129 = vmatprep.subr.mxu0 0.0
    %130 = vmatpush1.msra.mxu0 0.0
    %131 = vmatprep.subr.mxu0 0.0
    %132 = vmatpush1.msra.mxu0 0.0
    %133 = vmatprep.subr.mxu0 0.0
    %134 = vmatpush1.msra.mxu0 0.0
    %135 = vmatprep.subr.mxu0 0.0
    %136 = vmatpush1.msra.mxu0 0.0
    %137 = vmatprep.subr.mxu0 0.0
    %138 = vmatpush1.msra.mxu0 0.0
    %139 = vmatprep.mubr.f32.mxu0 0.0
    %140 = vmatmul.mubr.f32.gmra.mrb[0].mxu0 %v73
    %v141 = vpop.f32.mrb[0].mxu0
    %v142 = vadd.f32 %v69, %v141
    %v143 = vpop.f32.mrb[0].mxu0
    %144 = vdwg.mxu0
    %v145 = vtanh.pop %v142
    %v146 = vld [vmem:[#allocation6] sm:$0xff]
    %v147 = vld [vmem:[#allocation6 + $0x8] sm:$0xff]
    %v148 = vld [vmem:[#allocation6 + $0x10] sm:$0xff]
    %v149 = vld [vmem:[#allocation6 + $0x18] sm:$0xff]
    %v150 = vld [vmem:[#allocation6 + $0x20] sm:$0xff]
    %v151 = vld [vmem:[#allocation6 + $0x28] sm:$0xff]
    %v152 = vld [vmem:[#allocation6 + $0x30] sm:$0xff]
    %v153 = vld [vmem:[#allocation6 + $0x38] sm:$0xff]
    %v154 = vld [vmem:[#allocation6 + $0x40] sm:$0xff]
    %v155 = vld [vmem:[#allocation6 + $0x48] sm:$0xff]
    %v156 = vld [vmem:[#allocation6 + $0x50] sm:$0xff]
    %v157 = vld [vmem:[#allocation6 + $0x58] sm:$0xff]
    %v158 = vld [vmem:[#allocation6 + $0x60] sm:$0xff]
    %v159 = vld [vmem:[#allocation6 + $0x68] sm:$0xff]
    %v160 = vld [vmem:[#allocation6 + $0x70] sm:$0xff]
    %v161 = vld [vmem:[#allocation6 + $0x78] sm:$0xff]
    %v162 = vld [vmem:[%s4] sm:$0x1]
    %v164 = vlaneseq
    %v165 = vshrl.u32 %v164, 7
    %v166 = vsub.s32 0, %v165
    %v167 = vrot.slane %v162, %v166
    %169 = vmatprep.subr.mxu0 0.0
    %170 = vmatpush1.msra.mxu0 %v146
    %171 = vmatprep.subr.mxu0 0.0
    %172 = vmatpush1.msra.mxu0 %v147
    %173 = vmatprep.subr.mxu0 0.0
    %174 = vmatpush1.msra.mxu0 %v148
    %175 = vmatprep.subr.mxu0 0.0
    %176 = vmatpush1.msra.mxu0 %v149
    %177 = vmatprep.subr.mxu0 0.0
    %178 = vmatpush1.msra.mxu0 %v150
    %179 = vmatprep.subr.mxu0 0.0
    %180 = vmatpush1.msra.mxu0 %v151
    %181 = vmatprep.subr.mxu0 0.0
    %182 = vmatpush1.msra.mxu0 %v152
    %183 = vmatprep.subr.mxu0 0.0
    %184 = vmatpush1.msra.mxu0 %v153
    %185 = vmatprep.subr.mxu0 0.0
    %186 = vmatpush1.msra.mxu0 %v154
    %187 = vmatprep.subr.mxu0 0.0
    %188 = vmatpush1.msra.mxu0 %v155
    %189 = vmatprep.subr.mxu0 0.0
    %190 = vmatpush1.msra.mxu0 %v156
    %191 = vmatprep.subr.mxu0 0.0
    %192 = vmatpush1.msra.mxu0 %v157
    %193 = vmatprep.subr.mxu0 0.0
    %194 = vmatpush1.msra.mxu0 %v158
    %195 = vmatprep.subr.mxu0 0.0
    %196 = vmatpush1.msra.mxu0 %v159
    %197 = vmatprep.subr.mxu0 0.0
    %198 = vmatpush1.msra.mxu0 %v160
    %199 = vmatprep.subr.mxu0 0.0
    %200 = vmatpush1.msra.mxu0 %v161
    %201 = vmatprep.subr.mxu0 0.0
    %202 = vmatpush1.msra.mxu0 0.0
    %203 = vmatprep.subr.mxu0 0.0
    %204 = vmatpush1.msra.mxu0 0.0
    %205 = vmatprep.subr.mxu0 0.0
    %206 = vmatpush1.msra.mxu0 0.0
    %207 = vmatprep.subr.mxu0 0.0
    %208 = vmatpush1.msra.mxu0 0.0
    %209 = vmatprep.subr.mxu0 0.0
    %210 = vmatpush1.msra.mxu0 0.0
    %211 = vmatprep.subr.mxu0 0.0
    %212 = vmatpush1.msra.mxu0 0.0
    %213 = vmatprep.subr.mxu0 0.0
    %214 = vmatpush1.msra.mxu0 0.0
    %215 = vmatprep.subr.mxu0 0.0
    %216 = vmatpush1.msra.mxu0 0.0
    %217 = vmatprep.subr.mxu0 0.0
    %218 = vmatpush1.msra.mxu0 0.0
    %219 = vmatprep.subr.mxu0 0.0
    %220 = vmatpush1.msra.mxu0 0.0
    %221 = vmatprep.subr.mxu0 0.0
    %222 = vmatpush1.msra.mxu0 0.0
    %223 = vmatprep.subr.mxu0 0.0
    %224 = vmatpush1.msra.mxu0 0.0
    %225 = vmatprep.subr.mxu0 0.0
    %226 = vmatpush1.msra.mxu0 0.0
    %227 = vmatprep.subr.mxu0 0.0
    %228 = vmatpush1.msra.mxu0 0.0
    %229 = vmatprep.subr.mxu0 0.0
    %230 = vmatpush1.msra.mxu0 0.0
    %231 = vmatprep.subr.mxu0 0.0
    %232 = vmatpush1.msra.mxu0 0.0
    %233 = vmatprep.mubr.f32.mxu0 0.0
    %234 = vmatmul.mubr.f32.gmra.mrb[0].mxu0 %v145
    %v235 = vpop.f32.mrb[0].mxu0
    %v236 = vadd.f32 %v167, %v235
    %v237 = vpop.f32.mrb[0].mxu0
    %238 = vdwg.mxu0
    %239 = vst [vmem:[%s5] sm:$0xff] %v236
    // Predicated region
    $region34: #{actor_critic_forward.1} parent=1 // pred_check
      _
    $region35: #{actor_critic_forward.1} parent=1 // pred_check_branch
      %241 = sbr.rel (0) target = $region37
    $region36: #{actor_critic_forward.1} parent=1 // pred_region
      _
    $region37: #{actor_critic_forward.1} parent=1 // pred_fallthru
      _
    // Predicated region
    $region38: #{actor_critic_forward.1} parent=1 // pred_check
      _
    $region39: #{actor_critic_forward.1} parent=1 // pred_check_branch
      %243 = sbr.rel (0) target = $region41
    $region40: #{actor_critic_forward.1} parent=1 // pred_region
      _
    $region41: #{actor_critic_forward.1} parent=1 // pred_fallthru
      _
    %244 = vsyncpa [#allocation3], 1
    %245 = vsyncpa [#allocation5], 1

</llo_original>
